<compile_context>
chip_gen: v5e
topology: v5e:2x2
jax: 0.10.0
libtpu: 0.0.40
codegen_flags: <defaults>
</compile_context>

<pallas_src>
import math
import functools

import jax
import jax.numpy as jnp
from jax import lax
from jax.experimental import pallas as pl
from jax.experimental.pallas import tpu as pltpu


def glu_kernel(x_ref, lnw_ref, lnb_ref, w_ref, b_ref, o_ref):
    # x_ref: (bt, S, N); lnw/lnb: (S, N); w_ref: (N, 2H) bf16; b_ref: (1, 2H); o_ref: (bt, S, H)
    bt, S, N = x_ref.shape
    H = o_ref.shape[-1]
    x = x_ref[...].astype(jnp.float32)                          # (bt, S, N)

    # --- LayerNorm over the (S, N) slab, per batch element — single pass stats ---
    inv_count = 1.0 / float(S * N)
    s1 = jnp.sum(x, axis=(1, 2), keepdims=True)
    s2 = jnp.sum(x * x, axis=(1, 2), keepdims=True)
    mean = s1 * inv_count
    var = s2 * inv_count - mean * mean                          # E[x^2] - mean^2
    xn = (x - mean) * lax.rsqrt(var + 1e-5)
    xn = xn * lnw_ref[...].astype(jnp.float32) + lnb_ref[...].astype(jnp.float32)

    # --- GELU (tanh approximation -> EUP tanh; frees the VALU slot) ---
    c = math.sqrt(2.0 / math.pi)
    g = 0.5 * xn * (1.0 + jnp.tanh(c * (xn + 0.044715 * xn * xn * xn)))

    # --- Fused Linear: one (bt*S, N) @ (N, 2H) bf16 matmul, f32 accumulate ---
    # (Reshape is layout-free when S % 8 == 0; flatten at the wrapper otherwise.)
    g2 = g.reshape(bt * S, N).astype(jnp.bfloat16)
    y = jnp.dot(g2, w_ref[...], preferred_element_type=jnp.float32)
    y = y + b_ref[...].astype(jnp.float32)                      # (bt*S, 2H)

    # --- nn.GLU(dim=-1): value half * sigmoid(gate half).  Split at column H is
    #     lane-aligned whenever H % 128 == 0. ---
    a = y[:, :H]
    gate = y[:, H:]
    sig = pl.reciprocal(1.0 + jnp.exp(-gate), approx=True)      # EUP exp + vrcp
    o_ref[...] = (a * sig).reshape(bt, S, H).astype(o_ref.dtype)


def prepare_glu_params(lin_weight, lin_bias, *, mxu_dtype=jnp.bfloat16):
    """One-time conversion from the PyTorch Linear convention (2H, N) / (2H,) to
    the kernel layout: a fused, pre-transposed (N, 2H) weight in the MXU dtype
    (columns [0:H] = value half, [H:2H] = gate half — identical to the PyTorch
    row order) and a (1, 2H) f32 bias.  Call once at parameter-prep time."""
    two_h, _ = lin_weight.shape
    assert two_h % 2 == 0, "GLU needs an even output width"
    w = lin_weight.T.astype(mxu_dtype)                 # (N, 2H), bf16 for the MXU
    b = lin_bias.reshape(1, two_h).astype(jnp.float32)
    return w, b


def _pick_b_tile(B, S):
    """Target ~512-2048 rows of (b_tile*S, N) per grid step while keeping >=2
    grid steps (DMA/compute overlap + v7x megacore sharding of the batch axis)."""
    target_rows = 1024
    bt = max(1, min(B, target_rows // max(S, 1)))
    if B >= 2:
        bt = min(bt, B // 2)                           # keep >= 2 grid steps
    bt = max(bt, 1)
    while B % bt:                                      # largest divisor of B <= bt
        bt -= 1
    return bt


def glu_forward(x, ln_weight, ln_bias, w, b, *, b_tile=None, buffer_depth=None,
                vmem_limit_bytes=None):
    """x: (B, S, N). w/b from `prepare_glu_params` ((N, 2H) / (1, 2H)). Output: (B, S, H)."""
    B, S, N = x.shape
    two_h = w.shape[1]
    H = two_h // 2

    if b_tile is None:
        b_tile = _pick_b_tile(B, S)
    assert B % b_tile == 0, "B must be divisible by b_tile"
    grid = (B // b_tile,)

    if vmem_limit_bytes is None:
        # Double-buffered x/out blocks + resident weights + f32 in-kernel temporaries,
        # with headroom; cap at 48 MiB so the same wrapper fits v7x's 64 MiB VMEM.
        itemsize = jnp.dtype(x.dtype).itemsize
        step_bytes = (
            2 * b_tile * S * N * itemsize                  # x (double-buffered)
            + 2 * b_tile * S * H * itemsize                # out (double-buffered)
            + 2 * 2 * S * N * 4                            # LN weight + bias
            + 2 * (N * two_h * jnp.dtype(w.dtype).itemsize + two_h * 4)  # fused W + bias
            + 4 * b_tile * S * max(N, two_h) * 4           # f32 temporaries (xn, g, y)
        )
        vmem_limit_bytes = int(min(max(2 * step_bytes, 32 << 20), 48 << 20))

    def batch_map(i):
        return (i, 0, 0)

    def rep_map(i):
        return (0, 0)

    x_kwargs = {}
    o_kwargs = {}
    if buffer_depth is not None:
        # Deeper buffering only if the DMA is still exposed after tiling.
        x_kwargs["pipeline_mode"] = pl.Buffered(buffer_depth)
        o_kwargs["pipeline_mode"] = pl.Buffered(buffer_depth)

    return pl.pallas_call(
        glu_kernel,
        out_shape=jax.ShapeDtypeStruct((B, S, H), x.dtype),
        grid_spec=pltpu.PrefetchScalarGridSpec(
            num_scalar_prefetch=0,
            grid=grid,
            in_specs=[
                pl.BlockSpec((b_tile, S, N), batch_map, **x_kwargs),   # x
                pl.BlockSpec((S, N), rep_map),                         # LayerNorm weight
                pl.BlockSpec((S, N), rep_map),                         # LayerNorm bias
                pl.BlockSpec((N, two_h), rep_map),                     # fused Linear weight (bf16)
                pl.BlockSpec((1, two_h), rep_map),                     # fused Linear bias
            ],
            out_specs=pl.BlockSpec((b_tile, S, H), batch_map, **o_kwargs),
        ),
        compiler_params=pltpu.CompilerParams(
            # Batch-tile axis stays parallel so large B shards across v7x's 2 TCs.
            dimension_semantics=("parallel",),
            vmem_limit_bytes=vmem_limit_bytes,
        ),
    )(x, ln_weight, ln_bias, w, b)


def glu_reference(x, ln_weight, ln_bias, lin_weight, lin_bias):
    """Pure-JAX reference mirroring the PyTorch module (exact erf GELU, f32)."""
    xf = x.astype(jnp.float32)
    mean = jnp.mean(xf, axis=(1, 2), keepdims=True)
    var = jnp.mean((xf - mean) ** 2, axis=(1, 2), keepdims=True)
    xn = (xf - mean) / jnp.sqrt(var + 1e-5)
    xn = xn * ln_weight + ln_bias
    g = 0.5 * xn * (1.0 + lax.erf(xn / jnp.sqrt(2.0)))
    y = g @ lin_weight.T.astype(jnp.float32) + lin_bias.astype(jnp.float32)
    h = lin_weight.shape[0] // 2
    return (y[..., :h] * jax.nn.sigmoid(y[..., h:])).astype(x.dtype)


if __name__ == "__main__":
    # Small demo shapes for correctness only (don't tune kernel perf here).
    # nneur=128 keeps the GLU split / output lane-dense; S=8 keeps the in-kernel
    # reshape layout-free.
    B, S, N = 2, 8, 128              # batch, nseq, nneur
    expand_factor = 2
    H = expand_factor * N // 2

    key = jax.random.PRNGKey(0)
    kx, kw, kb = jax.random.split(key, 3)

    x = jax.random.normal(kx, (B, S, N), dtype=jnp.float32)

    # LayerNorm((nseq, nneur)) params: PyTorch default init (ones / zeros).
    ln_weight = jnp.ones((S, N), dtype=jnp.float32)
    ln_bias = jnp.zeros((S, N), dtype=jnp.float32)

    # Linear(nneur, expand_factor * nneur) params, PyTorch-style uniform init.
    bound = 1.0 / math.sqrt(N)
    lin_weight = jax.random.uniform(kw, (expand_factor * N, N),
                                    minval=-bound, maxval=bound, dtype=jnp.float32)
    lin_bias = jax.random.uniform(kb, (expand_factor * N,),
                                  minval=-bound, maxval=bound, dtype=jnp.float32)

    # One-time parameter prep (transpose + bf16 cast hoisted out of the forward path).
    w_fused, b_fused = prepare_glu_params(lin_weight, lin_bias)

    out = glu_forward(x, ln_weight, ln_bias, w_fused, b_fused)
    out = jax.block_until_ready(out)

    ref = glu_reference(x, ln_weight, ln_bias, lin_weight, lin_bias)
    assert out.shape == (B, S, H), (out.shape, (B, S, H))
    # Tolerance loosened vs. the f32/erf reference: bf16 MXU operands, tanh-approx
    # GELU and the approximate EUP reciprocal are deliberate throughput knobs.
    assert jnp.allclose(out, ref, atol=3e-2, rtol=3e-2), float(jnp.max(jnp.abs(out - ref)))

    print("KERNEL_OK")
</pallas_src>

<mosaic_0001>
module attributes {stable_mosaic.version = 11 : i64} {
  func.func @glu_kernel(%arg0: i32, %arg1: memref<1x8x128xf32, #tpu.memory_space<vmem>>, %arg2: memref<8x128xf32, #tpu.memory_space<vmem>>, %arg3: memref<8x128xf32, #tpu.memory_space<vmem>>, %arg4: memref<128x256xbf16, #tpu.memory_space<vmem>>, %arg5: memref<1x256xf32, #tpu.memory_space<vmem>>, %arg6: memref<1x8x128xf32, #tpu.memory_space<vmem>>) attributes {dimension_semantics = [#tpu.dimension_semantics<parallel>], iteration_bounds = array<i64: 2>, scalar_prefetch = 0 : i64, scratch_operands = 0 : i64, tpu.core_type = #tpu.core_type<tc>, window_params = [{transform_indices = @transform_0, window_bounds = array<i64: 1, 8, 128>}, {pipeline_mode = #tpu.pipeline_mode<synchronous>, transform_indices = @transform_1, window_bounds = array<i64: 8, 128>}, {pipeline_mode = #tpu.pipeline_mode<synchronous>, transform_indices = @transform_2, window_bounds = array<i64: 8, 128>}, {pipeline_mode = #tpu.pipeline_mode<synchronous>, transform_indices = @transform_3, window_bounds = array<i64: 128, 256>}, {pipeline_mode = #tpu.pipeline_mode<synchronous>, transform_indices = @transform_4, window_bounds = array<i64: 1, 256>}, {transform_indices = @transform_5, window_bounds = array<i64: 1, 8, 128>}]} {
    %c0 = arith.constant 0 : index
    %c0_0 = arith.constant 0 : index
    %c0_1 = arith.constant 0 : index
    %0 = vector.load %arg1[%c0, %c0_0, %c0_1] : memref<1x8x128xf32, #tpu.memory_space<vmem>>, vector<1x8x128xf32>
    %cst = arith.constant dense<0.000000e+00> : vector<1xf32>
    %1 = vector.multi_reduction <add>, %0, %cst [1, 2] : vector<1x8x128xf32> to vector<1xf32>
    %2 = vector.shape_cast %1 : vector<1xf32> to vector<1x1x1xf32>
    %3 = arith.mulf %0, %0 : vector<1x8x128xf32>
    %cst_2 = arith.constant dense<0.000000e+00> : vector<1xf32>
    %4 = vector.multi_reduction <add>, %3, %cst_2 [1, 2] : vector<1x8x128xf32> to vector<1xf32>
    %5 = vector.shape_cast %4 : vector<1xf32> to vector<1x1x1xf32>
    %cst_3 = arith.constant 9.765625E-4 : f32
    %6 = vector.broadcast %cst_3 : f32 to vector<1x1x1xf32>
    %7 = arith.mulf %2, %6 : vector<1x1x1xf32>
    %cst_4 = arith.constant 9.765625E-4 : f32
    %8 = vector.broadcast %cst_4 : f32 to vector<1x1x1xf32>
    %9 = arith.mulf %5, %8 : vector<1x1x1xf32>
    %10 = arith.mulf %7, %7 : vector<1x1x1xf32>
    %11 = arith.subf %9, %10 : vector<1x1x1xf32>
    %12 = vector.broadcast %7 : vector<1x1x1xf32> to vector<1x8x128xf32>
    %13 = arith.subf %0, %12 : vector<1x8x128xf32>
    %cst_5 = arith.constant 9.99999974E-6 : f32
    %14 = vector.broadcast %cst_5 : f32 to vector<1x1x1xf32>
    %15 = arith.addf %11, %14 : vector<1x1x1xf32>
    %16 = math.rsqrt %15 : vector<1x1x1xf32>
    %17 = vector.broadcast %16 : vector<1x1x1xf32> to vector<1x8x128xf32>
    %18 = arith.mulf %13, %17 : vector<1x8x128xf32>
    %c0_6 = arith.constant 0 : index
    %c0_7 = arith.constant 0 : index
    %19 = vector.load %arg2[%c0_6, %c0_7] : memref<8x128xf32, #tpu.memory_space<vmem>>, vector<8x128xf32>
    %20 = vector.shape_cast %19 : vector<8x128xf32> to vector<1x8x128xf32>
    %21 = arith.mulf %18, %20 : vector<1x8x128xf32>
    %c0_8 = arith.constant 0 : index
    %c0_9 = arith.constant 0 : index
    %22 = vector.load %arg3[%c0_8, %c0_9] : memref<8x128xf32, #tpu.memory_space<vmem>>, vector<8x128xf32>
    %23 = vector.shape_cast %22 : vector<8x128xf32> to vector<1x8x128xf32>
    %24 = arith.addf %21, %23 : vector<1x8x128xf32>
    %cst_10 = arith.constant 5.000000e-01 : f32
    %25 = vector.broadcast %cst_10 : f32 to vector<1x8x128xf32>
    %26 = arith.mulf %25, %24 : vector<1x8x128xf32>
    %cst_11 = arith.constant 4.471500e-02 : f32
    %27 = vector.broadcast %cst_11 : f32 to vector<1x8x128xf32>
    %28 = arith.mulf %27, %24 : vector<1x8x128xf32>
    %29 = arith.mulf %28, %24 : vector<1x8x128xf32>
    %30 = arith.mulf %29, %24 : vector<1x8x128xf32>
    %31 = arith.addf %24, %30 : vector<1x8x128xf32>
    %cst_12 = arith.constant 0.797884583 : f32
    %32 = vector.broadcast %cst_12 : f32 to vector<1x8x128xf32>
    %33 = arith.mulf %32, %31 : vector<1x8x128xf32>
    %34 = math.tanh %33 : vector<1x8x128xf32>
    %cst_13 = arith.constant 1.000000e+00 : f32
    %35 = vector.broadcast %cst_13 : f32 to vector<1x8x128xf32>
    %36 = arith.addf %35, %34 : vector<1x8x128xf32>
    %37 = arith.mulf %26, %36 : vector<1x8x128xf32>
    %38 = vector.shape_cast %37 : vector<1x8x128xf32> to vector<8x128xf32>
    %39 = arith.truncf %38 : vector<8x128xf32> to vector<8x128xbf16>
    %c0_14 = arith.constant 0 : index
    %c0_15 = arith.constant 0 : index
    %40 = vector.load %arg4[%c0_14, %c0_15] : memref<128x256xbf16, #tpu.memory_space<vmem>>, vector<128x256xbf16>
    %cst_16 = arith.constant dense<0.000000e+00> : vector<8x256xf32>
    %41 = tpu.matmul %39, %40, %cst_16 {dimension_numbers = #tpu.dot_dimension_numbers<[1], [0], [0], [1], [0, 0, 1, 1], [], []>} : vector<8x128xbf16>, vector<128x256xbf16>, vector<8x256xf32> -> vector<8x256xf32>
    %c0_17 = arith.constant 0 : index
    %c0_18 = arith.constant 0 : index
    %42 = vector.load %arg5[%c0_17, %c0_18] : memref<1x256xf32, #tpu.memory_space<vmem>>, vector<1x256xf32>
    %43 = vector.broadcast %42 : vector<1x256xf32> to vector<8x256xf32>
    %44 = arith.addf %41, %43 : vector<8x256xf32>
    %45 = vector.extract_strided_slice %44 {offsets = [0, 0], sizes = [8, 128], strides = [1, 1]} : vector<8x256xf32> to vector<8x128xf32>
    %46 = vector.extract_strided_slice %44 {offsets = [0, 128], sizes = [8, 128], strides = [1, 1]} : vector<8x256xf32> to vector<8x128xf32>
    %cst_19 = arith.constant 0.000000e+00 : f32
    %47 = vector.broadcast %cst_19 : f32 to vector<8x128xf32>
    %48 = arith.subf %47, %46 : vector<8x128xf32>
    %49 = math.exp %48 : vector<8x128xf32>
    %cst_20 = arith.constant 1.000000e+00 : f32
    %50 = vector.broadcast %cst_20 : f32 to vector<8x128xf32>
    %51 = arith.addf %50, %49 : vector<8x128xf32>
    %52 = tpu.reciprocal %51 {approx = true} : vector<8x128xf32> -> vector<8x128xf32>
    %53 = arith.mulf %45, %52 : vector<8x128xf32>
    %54 = vector.shape_cast %53 : vector<8x128xf32> to vector<1x8x128xf32>
    %c0_21 = arith.constant 0 : index
    %c0_22 = arith.constant 0 : index
    %c0_23 = arith.constant 0 : index
    %55 = vector.load %arg6[%c0_21, %c0_22, %c0_23] : memref<1x8x128xf32, #tpu.memory_space<vmem>>, vector<1x8x128xf32>
    tpu.vector_store %arg6[%c0_21, %c0_22, %c0_23], %54 {strides = array<i32>} : memref<1x8x128xf32, #tpu.memory_space<vmem>>, vector<1x8x128xf32>,
    return
  }
  func.func @transform_0(%arg0: i32) -> (i32, i32, i32) {
    %c0_i32 = arith.constant 0 : i32
    %c0_i32_0 = arith.constant 0 : i32
    %c0_i32_1 = arith.constant 0 : i32
    return %arg0, %c0_i32, %c0_i32_0 : i32, i32, i32
  }
  func.func @transform_1(%arg0: i32) -> (i32, i32) {
    %c0_i32 = arith.constant 0 : i32
    %c0_i32_0 = arith.constant 0 : i32
    %c0_i32_1 = arith.constant 0 : i32
    return %c0_i32, %c0_i32_0 : i32, i32
  }
  func.func @transform_2(%arg0: i32) -> (i32, i32) {
    %c0_i32 = arith.constant 0 : i32
    %c0_i32_0 = arith.constant 0 : i32
    %c0_i32_1 = arith.constant 0 : i32
    return %c0_i32, %c0_i32_0 : i32, i32
  }
  func.func @transform_3(%arg0: i32) -> (i32, i32) {
    %c0_i32 = arith.constant 0 : i32
    %c0_i32_0 = arith.constant 0 : i32
    %c0_i32_1 = arith.constant 0 : i32
    return %c0_i32, %c0_i32_0 : i32, i32
  }
  func.func @transform_4(%arg0: i32) -> (i32, i32) {
    %c0_i32 = arith.constant 0 : i32
    %c0_i32_0 = arith.constant 0 : i32
    %c0_i32_1 = arith.constant 0 : i32
    return %c0_i32, %c0_i32_0 : i32, i32
  }
  func.func @transform_5(%arg0: i32) -> (i32, i32, i32) {
    %c0_i32 = arith.constant 0 : i32
    %c0_i32_0 = arith.constant 0 : i32
    %c0_i32_1 = arith.constant 0 : i32
    return %arg0, %c0_i32, %c0_i32_0 : i32, i32, i32
  }
}

</mosaic_0001>

<llo_original>
// kernel: tpu_custom_call.1
$region0: #{tpu_custom_call.1}
  #allocation0 [shape = 'u32[]', space=smem, size = 0x4, offset = 0x4, fixed_abs, tag = 'smem constant byte address 0x4 - core index']
  #allocation1 [shape = 'u32[72,128]{1,0:T(1,128)}', space=vmem, size = 0x9000, scoped, tag = 'internal scratch']
  %s0 = inlined_call_operand.hbm [shape: f32[2,8,128], index: 0, kind: input, shape index: {}]
  %s1 = inlined_call_operand.hbm [shape: f32[8,128], index: 1, kind: input, shape index: {}]
  %s2 = inlined_call_operand.hbm [shape: f32[8,128], index: 2, kind: input, shape index: {}]
  %s3 = inlined_call_operand.hbm [shape: bf16[128,256], index: 3, kind: input, shape index: {}]
  %s4 = inlined_call_operand.vmem [shape: f32[1,256], index: 4, kind: input, shape index: {}]
  %s5 = inlined_call_operand.hbm [shape: f32[2,8,128], index: 5, kind: output, shape index: {}]
  %s6 = sld [smem:[#allocation0]]
  $region69: #{tpu_custom_call.1} parent=0
    _
  %s8 = ssub.s32 1, %s6
  %s9 = scalar_select 0, %s8, %s6
  $region1: #{tpu_custom_call.1} parent=0
    #allocation2 [shape = 'u8[8192]{0}', space=vmem, size = 0x2000, scoped, tag = 'input window, operand 0']
    #allocation3 [shape = 's32[2]{0}', space=sflag, size = 0x8, scoped, tag = 'scoped memory for tpu_custom_call.1']
    #allocation4 [shape = 's32[2]{0}', space=sflag, size = 0x8, scoped, tag = 'scoped memory for tpu_custom_call.1']
    #allocation5 [shape = 'u8[4096]{0}', space=vmem, size = 0x1000, scoped, tag = 'input window, operand 1, single buffered']
    #allocation6 [shape = 's32[1]{0}', space=sflag, size = 0x4, scoped, tag = 'scoped memory for tpu_custom_call.1']
    #allocation7 [shape = 'u8[4096]{0}', space=vmem, size = 0x1000, scoped, tag = 'input window, operand 2, single buffered']
    #allocation8 [shape = 'u8[65536]{0}', space=vmem, size = 0x10000, scoped, tag = 'input window, operand 3, single buffered']
    #allocation9 [shape = 's32[1]{0}', space=sflag, size = 0x4, scoped, tag = 'scoped memory for tpu_custom_call.1']
    #allocation10 [shape = 'u8[8192]{0}', space=vmem, size = 0x2000, scoped, tag = 'output window, operand 0']
    %10 = vsyncpa [#allocation3], 0
    %s11 = scalar_lea.sflag [#allocation3], 1
    %12 = vsyncpa %s11, 0
    %13 = vsyncpa [#allocation6], 0
    %14 = vsyncpa [#allocation9], 0
    %15 = vsyncpa [#allocation4], 0
    %s16 = scalar_lea.sflag [#allocation4], 1
    %17 = vsyncpa %s16, 0
    loop: start=0, step=1, limit=4
    $region2: #{tpu_custom_call.1} parent=1 // loop_pre_header
      _
    $region3: #{tpu_custom_call.1} parent=1 // loop_header
      %s19 = sphi 0, %s23
      %p20 = scmp.ge.s32.totalorder %s19, 4
      %s29 = sphi 0, %s31
      %s32 = sphi 0, %s29
      %s33 = sphi 0, %s32
      %s49 = sphi 0, %s33
      %s53 = sphi 0, %s53
      %s55 = sphi 0, %s53
      %s56 = sphi 0, %s55
      %s70 = sphi 0, %s56
      %s74 = sphi 0, %s74
      %s76 = sphi 0, %s74
      %s77 = sphi 0, %s76
      %s91 = sphi 0, %s77
      %s95 = sphi 0, %s95
      %s97 = sphi 0, %s95
      %s98 = sphi 0, %s97
      %s112 = sphi 0, %s98
      %s116 = sphi 0, %s116
      %s118 = sphi 0, %s116
      %s119 = sphi 0, %s118
      %s133 = sphi 0, %s119
      %s139 = sphi 0, %s141
      %s142 = sphi 0, %s139
      %s143 = sphi 0, %s142
      %s159 = sphi 0, %s143
    $region4: #{tpu_custom_call.1} parent=1 // loop_header_branch
      %22 = sbr.rel (%p20) target = $region8
    $region5: #{tpu_custom_call.1} parent=1 // loop_body
      %s24 = ssub.s32 %s19, 1
      %s25 = ssub.s32 %s19, 2
      %s26 = sadd.s32 %s19, 1
      %s27 = ssub.s32 %s19, %s26
      %p28 = scmp.eq.s32.totalorder %s27, 0
      %s30 = sadd.s32 %s29, 1
      %s31 = scalar_select %p28, %s29, %s30
      %p34 = pneg %p28
      %p35 = scmp.eq.s32.totalorder %s19, 1
      %p36 = por %p34, %p35
      %p37 = scmp.ne.s32.totalorder %s29, %s32
      %p38 = scmp.eq.s32.totalorder %s19, 0
      %p39 = por %p37, %p38
      %p40 = scmp.ne.s32.totalorder %s29, %s32
      %p41 = scmp.eq.s32.totalorder %s24, 1
      %p42 = por %p40, %p41
      %p43 = scmp.ne.s32.totalorder %s32, %s33
      %p44 = scmp.eq.s32.totalorder %s24, 0
      %p45 = por %p43, %p44
      %p46 = scmp.ne.s32.totalorder %s32, %s33
      %p47 = scmp.eq.s32.totalorder %s25, 1
      %p48 = por %p46, %p47
      %p50 = scmp.ne.s32.totalorder %s33, %s49
      %p51 = scmp.eq.s32.totalorder %s25, 0
      %p52 = por %p50, %p51
      %s54 = sadd.s32 %s53, 1
      %p57 = scmp.eq.s32.totalorder %s19, 1
      %p58 = scmp.ne.s32.totalorder %s53, %s55
      %p59 = scmp.eq.s32.totalorder %s19, 0
      %p60 = por %p58, %p59
      %p61 = scmp.ne.s32.totalorder %s53, %s55
      %p62 = scmp.eq.s32.totalorder %s24, 1
      %p63 = por %p61, %p62
      %p64 = scmp.ne.s32.totalorder %s55, %s56
      %p65 = scmp.eq.s32.totalorder %s24, 0
      %p66 = por %p64, %p65
      %p67 = scmp.ne.s32.totalorder %s55, %s56
      %p68 = scmp.eq.s32.totalorder %s25, 1
      %p69 = por %p67, %p68
      %p71 = scmp.ne.s32.totalorder %s56, %s70
      %p72 = scmp.eq.s32.totalorder %s25, 0
      %p73 = por %p71, %p72
      %s75 = sadd.s32 %s74, 1
      %p78 = scmp.eq.s32.totalorder %s19, 1
      %p79 = scmp.ne.s32.totalorder %s74, %s76
      %p80 = scmp.eq.s32.totalorder %s19, 0
      %p81 = por %p79, %p80
      %p82 = scmp.ne.s32.totalorder %s74, %s76
      %p83 = scmp.eq.s32.totalorder %s24, 1
      %p84 = por %p82, %p83
      %p85 = scmp.ne.s32.totalorder %s76, %s77
      %p86 = scmp.eq.s32.totalorder %s24, 0
      %p87 = por %p85, %p86
      %p88 = scmp.ne.s32.totalorder %s76, %s77
      %p89 = scmp.eq.s32.totalorder %s25, 1
      %p90 = por %p88, %p89
      %p92 = scmp.ne.s32.totalorder %s77, %s91
      %p93 = scmp.eq.s32.totalorder %s25, 0
      %p94 = por %p92, %p93
      %s96 = sadd.s32 %s95, 1
      %p99 = scmp.eq.s32.totalorder %s19, 1
      %p100 = scmp.ne.s32.totalorder %s95, %s97
      %p101 = scmp.eq.s32.totalorder %s19, 0
      %p102 = por %p100, %p101
      %p103 = scmp.ne.s32.totalorder %s95, %s97
      %p104 = scmp.eq.s32.totalorder %s24, 1
      %p105 = por %p103, %p104
      %p106 = scmp.ne.s32.totalorder %s97, %s98
      %p107 = scmp.eq.s32.totalorder %s24, 0
      %p108 = por %p106, %p107
      %p109 = scmp.ne.s32.totalorder %s97, %s98
      %p110 = scmp.eq.s32.totalorder %s25, 1
      %p111 = por %p109, %p110
      %p113 = scmp.ne.s32.totalorder %s98, %s112
      %p114 = scmp.eq.s32.totalorder %s25, 0
      %p115 = por %p113, %p114
      %s117 = sadd.s32 %s116, 1
      %p120 = scmp.eq.s32.totalorder %s19, 1
      %p121 = scmp.ne.s32.totalorder %s116, %s118
      %p122 = scmp.eq.s32.totalorder %s19, 0
      %p123 = por %p121, %p122
      %p124 = scmp.ne.s32.totalorder %s116, %s118
      %p125 = scmp.eq.s32.totalorder %s24, 1
      %p126 = por %p124, %p125
      %p127 = scmp.ne.s32.totalorder %s118, %s119
      %p128 = scmp.eq.s32.totalorder %s24, 0
      %p129 = por %p127, %p128
      %p130 = scmp.ne.s32.totalorder %s118, %s119
      %p131 = scmp.eq.s32.totalorder %s25, 1
      %p132 = por %p130, %p131
      %p134 = scmp.ne.s32.totalorder %s119, %s133
      %p135 = scmp.eq.s32.totalorder %s25, 0
      %p136 = por %p134, %p135
      %s137 = ssub.s32 %s19, %s26
      %p138 = scmp.eq.s32.totalorder %s137, 0
      %s140 = sadd.s32 %s139, 1
      %s141 = scalar_select %p138, %s139, %s140
      %p144 = pneg %p138
      %p145 = scmp.eq.s32.totalorder %s19, 1
      %p146 = por %p144, %p145
      %p147 = scmp.ne.s32.totalorder %s139, %s142
      %p148 = scmp.eq.s32.totalorder %s19, 0
      %p149 = por %p147, %p148
      %p150 = scmp.ne.s32.totalorder %s139, %s142
      %p151 = scmp.eq.s32.totalorder %s24, 1
      %p152 = por %p150, %p151
      %p153 = scmp.ne.s32.totalorder %s142, %s143
      %p154 = scmp.eq.s32.totalorder %s24, 0
      %p155 = por %p153, %p154
      %p156 = scmp.ne.s32.totalorder %s142, %s143
      %p157 = scmp.eq.s32.totalorder %s25, 1
      %p158 = por %p156, %p157
      %p160 = scmp.ne.s32.totalorder %s143, %s159
      %p161 = scmp.eq.s32.totalorder %s25, 0
      %p162 = por %p160, %p161
      %p163 = scmp.le.s32.totalorder 1, %s19
      %p164 = scmp.lt.s32.totalorder %s19, 3
      %p165 = pnand %p163, %p164
      %p166 = pneg %p165
      // Predicated region
      $region9: #{tpu_custom_call.1} parent=5 // pred_check
        _
      $region10: #{tpu_custom_call.1} parent=5 // pred_check_branch
        %168 = sbr.rel (%p165) target = $region12
      $region11: #{tpu_custom_call.1} parent=5 // pred_region
        %s169 = ssub.s32 %s19, 1
        // Predicated region
        $region13: #{tpu_custom_call.1} parent=11 // pred_check
          %p170 = pneg %p66
        $region14: #{tpu_custom_call.1} parent=11 // pred_check_branch
          %172 = sbr.rel (%p170) target = $region16
        $region15: #{tpu_custom_call.1} parent=11 // pred_region
          %174 = vsyncadd [#allocation6], 0
          %s176 = sshll.u32 %s1, 4
          %s177 = int_to_ptr.hbm [resolvable:$true] %s176
          %s178 = sshll.u32 [#allocation5], 4
          %s179 = int_to_ptr.vmem [resolvable:$true] %s178
          %181 = dma.hbm_to_vmem [thread:$0]  %s177, 128, %s179, [#allocation6]
        $region16: #{tpu_custom_call.1} parent=11 // pred_fallthru
          _
        // Predicated region
        $region17: #{tpu_custom_call.1} parent=11 // pred_check
          %p182 = pneg %p87
        $region18: #{tpu_custom_call.1} parent=11 // pred_check_branch
          %184 = sbr.rel (%p182) target = $region20
        $region19: #{tpu_custom_call.1} parent=11 // pred_region
          %186 = vsyncadd [#allocation6], 0
          %s188 = sshll.u32 %s2, 4
          %s189 = int_to_ptr.hbm [resolvable:$true] %s188
          %s190 = sshll.u32 [#allocation7], 4
          %s191 = int_to_ptr.vmem [resolvable:$true] %s190
          %193 = dma.hbm_to_vmem [thread:$0]  %s189, 128, %s191, [#allocation6]
        $region20: #{tpu_custom_call.1} parent=11 // pred_fallthru
          _
        // Predicated region
        $region21: #{tpu_custom_call.1} parent=11 // pred_check
          %p194 = pneg %p108
        $region22: #{tpu_custom_call.1} parent=11 // pred_check_branch
          %196 = sbr.rel (%p194) target = $region24
        $region23: #{tpu_custom_call.1} parent=11 // pred_region
          %198 = vsyncadd [#allocation9], 0
          %s199 = sshll.u32 %s3, 4
          %s200 = int_to_ptr.hbm [resolvable:$true] %s199
          %s201 = sshll.u32 [#allocation8], 4
          %s202 = int_to_ptr.vmem [resolvable:$true] %s201
          %207 = dma.hbm_to_vmem [thread:$0]  %s200, 2048, %s202, [#allocation9], 128, 128, 8
        $region24: #{tpu_custom_call.1} parent=11 // pred_fallthru
          _
        // Predicated region
        $region25: #{tpu_custom_call.1} parent=11 // pred_check
          %p208 = pneg %p129
        $region26: #{tpu_custom_call.1} parent=11 // pred_check_branch
          %210 = sbr.rel (%p208) target = $region28
        $region27: #{tpu_custom_call.1} parent=11 // pred_region
          _
        $region28: #{tpu_custom_call.1} parent=11 // pred_fallthru
          _
      $region12: #{tpu_custom_call.1} parent=5 // pred_fallthru
        _
      %p211 = scmp.lt.s32.totalorder %s19, 2
      // Predicated region
      $region29: #{tpu_custom_call.1} parent=5 // pred_check
        %p212 = pneg %p211
      $region30: #{tpu_custom_call.1} parent=5 // pred_check_branch
        %214 = sbr.rel (%p212) target = $region32
      $region31: #{tpu_custom_call.1} parent=5 // pred_region
        // Predicated region
        $region33: #{tpu_custom_call.1} parent=31 // pred_check
          %p215 = pneg %p39
        $region34: #{tpu_custom_call.1} parent=31 // pred_check_branch
          %217 = sbr.rel (%p215) target = $region36
        $region35: #{tpu_custom_call.1} parent=31 // pred_region
          %s218 = sand.u32 %s29, 1
          %s219 = scalar_lea.sflag [#allocation3], %s218
          %s220 = sand.u32 %s29, 1
          %s221 = smul.addr %s220, 8
          %s222 = scalar_lea.vmem [#allocation2], %s221
          %224 = vsyncadd %s219, 0
          %s225 = smul.addr %s19, 8
          %s226 = scalar_lea.hbm %s0, %s225
          %s228 = sshll.u32 %s226, 4
          %s229 = int_to_ptr.hbm [resolvable:$true] %s228
          %s230 = sshll.u32 %s222, 4
          %s231 = int_to_ptr.vmem [resolvable:$true] %s230
          %233 = dma.hbm_to_vmem [thread:$0]  %s229, 128, %s231, %s219
        $region36: #{tpu_custom_call.1} parent=31 // pred_fallthru
          _
      $region32: #{tpu_custom_call.1} parent=5 // pred_fallthru
        _
      %p234 = scmp.le.s32.totalorder 1, %s19
      %p235 = scmp.lt.s32.totalorder %s19, 3
      %p236 = pnand %p234, %p235
      %p237 = pneg %p236
      // Predicated region
      $region37: #{tpu_custom_call.1} parent=5 // pred_check
        _
      $region38: #{tpu_custom_call.1} parent=5 // pred_check_branch
        %239 = sbr.rel (%p236) target = $region40
      $region39: #{tpu_custom_call.1} parent=5 // pred_region
        %s240 = ssub.s32 %s19, 1
        %s241 = sand.u32 %s32, 1
        %s242 = scalar_lea.sflag [#allocation3], %s241
        %s243 = sand.u32 %s32, 1
        %s244 = smul.addr %s243, 8
        %s245 = scalar_lea.vmem [#allocation2], %s244
        // Predicated region
        $region41: #{tpu_custom_call.1} parent=39 // pred_check
          %p246 = pneg %p45
        $region42: #{tpu_custom_call.1} parent=39 // pred_check_branch
          %248 = sbr.rel (%p246) target = $region44
        $region43: #{tpu_custom_call.1} parent=39 // pred_region
          %250 = dma.done %s242, 128
        $region44: #{tpu_custom_call.1} parent=39 // pred_fallthru
          _
        // Predicated region
        $region45: #{tpu_custom_call.1} parent=39 // pred_check
          %p251 = pneg %p66
        $region46: #{tpu_custom_call.1} parent=39 // pred_check_branch
          %253 = sbr.rel (%p251) target = $region48
        $region47: #{tpu_custom_call.1} parent=39 // pred_region
          %255 = dma.done [#allocation6], 128
        $region48: #{tpu_custom_call.1} parent=39 // pred_fallthru
          _
        // Predicated region
        $region49: #{tpu_custom_call.1} parent=39 // pred_check
          %p256 = pneg %p87
        $region50: #{tpu_custom_call.1} parent=39 // pred_check_branch
          %258 = sbr.rel (%p256) target = $region52
        $region51: #{tpu_custom_call.1} parent=39 // pred_region
          %260 = dma.done [#allocation6], 128
        $region52: #{tpu_custom_call.1} parent=39 // pred_fallthru
          _
        // Predicated region
        $region53: #{tpu_custom_call.1} parent=39 // pred_check
          %p261 = pneg %p108
        $region54: #{tpu_custom_call.1} parent=39 // pred_check_branch
          %263 = sbr.rel (%p261) target = $region56
        $region55: #{tpu_custom_call.1} parent=39 // pred_region
          %265 = dma.done [#allocation9], 2048
        $region56: #{tpu_custom_call.1} parent=39 // pred_fallthru
          _
        %s266 = sand.u32 %s32, 1
        %s267 = scalar_lea.sflag [#allocation3], %s266
        %s268 = sand.u32 %s32, 1
        %s269 = smul.addr %s268, 8
        %s270 = scalar_lea.vmem [#allocation2], %s269
        %p271 = pneg %p45
        %p272 = pneg %p42
        %p273 = pneg %p66
        %p274 = pneg %p63
        %p275 = pneg %p87
        %p276 = pneg %p84
        %p277 = pneg %p108
        %p278 = pneg %p105
        %p279 = pneg %p129
        %p280 = pneg %p126
        %p281 = pneg %p155
        %p282 = pneg %p152
        %s283 = sand.u32 %s142, 1
        %s284 = scalar_lea.sflag [#allocation4], %s283
        %s285 = sand.u32 %s142, 1
        %s286 = smul.addr %s285, 8
        %s287 = scalar_lea.vmem [#allocation10], %s286
        %v288 = vld [vmem:[%s245] sm:$0xff]
        %289 = vadd.xlane.f32.xlu0 %v288
        %v290 = vpop.xlane.xlu0 %289
        %v291 = vrot.slane %v290, 4
        %v292 = vadd.f32 %v290, %v291
        %v293 = vrot.slane %v292, 2
        %v294 = vadd.f32 %v292, %v293
        %v295 = vrot.slane %v294, 1
        %v296 = vadd.f32 %v294, %v295
        %v297 = vmul.f32 %v288, %v288
        %298 = vadd.xlane.f32.xlu0 %v297
        %v299 = vpop.xlane.xlu0 %298
        %v300 = vrot.slane %v299, 4
        %v301 = vadd.f32 %v299, %v300
        %v302 = vrot.slane %v301, 2
        %v303 = vadd.f32 %v301, %v302
        %v304 = vrot.slane %v303, 1
        %v305 = vadd.f32 %v303, %v304
        %v306 = vmul.f32 %v296, 0.0009765625
        %v307 = vmul.f32 %v305, 0.0009765625
        %v308 = vmul.f32 %v306, %v306
        %v309 = vsub.f32 %v307, %v308
        %v310 = vsub.f32 %v288, %v306
        %v311 = vadd.f32 %v309, 1e-05
        %v312 = vrsqrt.pop %v311
        %v313 = vmul.f32 %v312, %v311
        %v314 = vmul.f32 %v313, %v312
        %v315 = vmul.f32 0.5, %v314
        %v316 = vsub.f32 1.5, %v315
        %v317 = vmul.f32 %v312, %v316
        %vm318 = vweird.f32 %v311
        %vm319 = vweird.f32 %v312
        %vm320 = vmor %vm318, %vm319
        %v321 = vsel %vm320, %v312, %v317
        %v322 = vmul.f32 %v310, %v321
        %v323 = vld [vmem:[#allocation5] sm:$0xff]
        %v324 = vmul.f32 %v322, %v323
        %v325 = vld [vmem:[#allocation7] sm:$0xff]
        %v326 = vadd.f32 %v324, %v325
        %v327 = vmul.f32 %v326, 0.5
        %v328 = vmul.f32 %v326, 0.044715
        %v329 = vmul.f32 %v328, %v326
        %v330 = vmul.f32 %v329, %v326
        %v331 = vadd.f32 %v326, %v330
        %v332 = vmul.f32 %v331, 0.7978846
        %v333 = vtanh.pop %v332
        %v334 = vadd.f32 %v333, 1.0
        %v335 = vmul.f32 %v327, %v334
        %v336 = vpack.c.bf16 %v335, %v335
        %v337 = vld [vmem:[#allocation8] sm:$0xff]
        %v338 = vld [vmem:[#allocation8 + $0x8] sm:$0xff]
        %v339 = vld [vmem:[#allocation8 + $0x10] sm:$0xff]
        %v340 = vld [vmem:[#allocation8 + $0x18] sm:$0xff]
        %v341 = vld [vmem:[#allocation8 + $0x20] sm:$0xff]
        %v342 = vld [vmem:[#allocation8 + $0x28] sm:$0xff]
        %v343 = vld [vmem:[#allocation8 + $0x30] sm:$0xff]
        %v344 = vld [vmem:[#allocation8 + $0x38] sm:$0xff]
        %v345 = vld [vmem:[#allocation8 + $0x40] sm:$0xff]
        %v346 = vld [vmem:[#allocation8 + $0x48] sm:$0xff]
        %v347 = vld [vmem:[#allocation8 + $0x50] sm:$0xff]
        %v348 = vld [vmem:[#allocation8 + $0x58] sm:$0xff]
        %v349 = vld [vmem:[#allocation8 + $0x60] sm:$0xff]
        %v350 = vld [vmem:[#allocation8 + $0x68] sm:$0xff]
        %v351 = vld [vmem:[#allocation8 + $0x70] sm:$0xff]
        %v352 = vld [vmem:[#allocation8 + $0x78] sm:$0xff]
        %v353 = vld [vmem:[%s4] sm:$0x3]
        %v355 = vperm.slane %v353, 0
        %v356 = vperm.slane %v353, 1
        %v375 = vunpack.c.l.b16 %v337
        %v376 = vunpack.c.h.b16 %v337
        %v377 = vunpack.c.l.b16 %v338
        %v378 = vunpack.c.h.b16 %v338
        %v379 = vunpack.c.l.b16 %v339
        %v380 = vunpack.c.h.b16 %v339
        %v381 = vunpack.c.l.b16 %v340
        %v382 = vunpack.c.h.b16 %v340
        %v383 = vunpack.c.l.b16 %v341
        %v384 = vunpack.c.h.b16 %v341
        %v385 = vunpack.c.l.b16 %v342
        %v386 = vunpack.c.h.b16 %v342
        %v387 = vunpack.c.l.b16 %v343
        %v388 = vunpack.c.h.b16 %v343
        %v389 = vunpack.c.l.b16 %v344
        %v390 = vunpack.c.h.b16 %v344
        %v391 = vunpack.c.l.b16 %v345
        %v392 = vunpack.c.h.b16 %v345
        %v393 = vunpack.c.l.b16 %v346
        %v394 = vunpack.c.h.b16 %v346
        %v395 = vunpack.c.l.b16 %v347
        %v396 = vunpack.c.h.b16 %v347
        %v397 = vunpack.c.l.b16 %v348
        %v398 = vunpack.c.h.b16 %v348
        %v399 = vunpack.c.l.b16 %v349
        %v400 = vunpack.c.h.b16 %v349
        %v401 = vunpack.c.l.b16 %v350
        %v402 = vunpack.c.h.b16 %v350
        %v403 = vunpack.c.l.b16 %v351
        %v404 = vunpack.c.h.b16 %v351
        %v405 = vunpack.c.l.b16 %v352
        %v406 = vunpack.c.h.b16 %v352
        %v407 = vpack.c.b16 %v377, %v375
        %v408 = vpack.c.b16 %v378, %v376
        %v409 = vpack.c.b16 %v381, %v379
        %v410 = vpack.c.b16 %v382, %v380
        %v411 = vpack.c.b16 %v385, %v383
        %v412 = vpack.c.b16 %v386, %v384
        %v413 = vpack.c.b16 %v389, %v387
        %v414 = vpack.c.b16 %v390, %v388
        %v415 = vpack.c.b16 %v393, %v391
        %v416 = vpack.c.b16 %v394, %v392
        %v417 = vpack.c.b16 %v397, %v395
        %v418 = vpack.c.b16 %v398, %v396
        %v419 = vpack.c.b16 %v401, %v399
        %v420 = vpack.c.b16 %v402, %v400
        %v421 = vpack.c.b16 %v405, %v403
        %v422 = vpack.c.b16 %v406, %v404
        %439 = vmatpush.bf16.msra.mxu0 %v421
        %440 = vmatpush.bf16.msra.mxu0 %v419
        %441 = vmatpush.bf16.msra.mxu0 %v417
        %442 = vmatpush.bf16.msra.mxu0 %v415
        %443 = vmatpush.bf16.msra.mxu0 %v413
        %444 = vmatpush.bf16.msra.mxu0 %v411
        %445 = vmatpush.bf16.msra.mxu0 %v409
        %446 = vmatpush.bf16.msra.mxu0 %v407
        %447 = vmatmul.bf16.gmra.mxu0 %v336
        %v448 = vpop.f32.mrf.mxu0
        %v449 = vadd.f32 %v355, %v448
        %v450 = vpop.f32.mrf.mxu0
        %451 = vdwg.mxu0
        %452 = vmatpush.bf16.msra.mxu0 %v422
        %453 = vmatpush.bf16.msra.mxu0 %v420
        %454 = vmatpush.bf16.msra.mxu0 %v418
        %455 = vmatpush.bf16.msra.mxu0 %v416
        %456 = vmatpush.bf16.msra.mxu0 %v414
        %457 = vmatpush.bf16.msra.mxu0 %v412
        %458 = vmatpush.bf16.msra.mxu0 %v410
        %459 = vmatpush.bf16.msra.mxu0 %v408
        %460 = vmatmul.bf16.gmra.mxu0 %v336
        %v461 = vpop.f32.mrf.mxu0
        %v462 = vadd.f32 %v356, %v461
        %v463 = vpop.f32.mrf.mxu0
        %464 = vdwg.mxu0
        %v465 = vsub.f32 0.0, %v462
        %v466 = vmul.f32 %v465, 1.442695
        %v467 = vpow.pop %v466
        %v468 = vadd.f32 %v467, 1.0
        %v469 = vrcp.pop %v468
        %v470 = vmul.f32 %v449, %v469
        %471 = vst [vmem:[%s287] sm:$0xff] %v470
        %s472 = sand.u32 %s142, 1
        %s473 = scalar_lea.sflag [#allocation4], %s472
        %s474 = sand.u32 %s142, 1
        %s475 = smul.addr %s474, 8
        %s476 = scalar_lea.vmem [#allocation10], %s475
        // Predicated region
        $region57: #{tpu_custom_call.1} parent=39 // pred_check
          %p477 = pneg %p152
        $region58: #{tpu_custom_call.1} parent=39 // pred_check_branch
          %479 = sbr.rel (%p477) target = $region60
        $region59: #{tpu_custom_call.1} parent=39 // pred_region
          %481 = vsyncadd %s473, 0
          %s482 = smul.addr %s24, 8
          %s483 = scalar_lea.hbm %s5, %s482
          %s485 = sshll.u32 %s476, 4
          %s486 = int_to_ptr.vmem [resolvable:$true] %s485
          %s487 = sshll.u32 %s483, 4
          %s488 = int_to_ptr.hbm [resolvable:$true] %s487
          %490 = dma.vmem_to_hbm [thread:$0]  %s486, 128, %s488, %s473
        $region60: #{tpu_custom_call.1} parent=39 // pred_fallthru
          _
      $region40: #{tpu_custom_call.1} parent=5 // pred_fallthru
        _
      %p491 = scmp.le.s32.totalorder 2, %s19
      // Predicated region
      $region61: #{tpu_custom_call.1} parent=5 // pred_check
        %p492 = pneg %p491
      $region62: #{tpu_custom_call.1} parent=5 // pred_check_branch
        %494 = sbr.rel (%p492) target = $region64
      $region63: #{tpu_custom_call.1} parent=5 // pred_region
        %s495 = ssub.s32 %s19, 2
        // Predicated region
        $region65: #{tpu_custom_call.1} parent=63 // pred_check
          %p496 = pneg %p158
        $region66: #{tpu_custom_call.1} parent=63 // pred_check_branch
          %498 = sbr.rel (%p496) target = $region68
        $region67: #{tpu_custom_call.1} parent=63 // pred_region
          %s499 = sand.u32 %s143, 1
          %s500 = scalar_lea.sflag [#allocation4], %s499
          %s501 = sand.u32 %s143, 1
          %s502 = smul.addr %s501, 8
          %s503 = scalar_lea.vmem [#allocation10], %s502
          %505 = dma.done %s500, 128
        $region68: #{tpu_custom_call.1} parent=63 // pred_fallthru
          _
      $region64: #{tpu_custom_call.1} parent=5 // pred_fallthru
        _
    $region6: #{tpu_custom_call.1} parent=1 // loop_footer
      %s23 = sadd.s32 1, %s19
    $region7: #{tpu_custom_call.1} parent=1 // loop_footer_branch
      %18 = sbr.rel target = $region3
    $region8: #{tpu_custom_call.1} parent=1 // loop_exit
      _
    %506 = vsyncpa [#allocation3], 1
    %s507 = scalar_lea.sflag [#allocation3], 1
    %508 = vsyncpa %s507, 1
    %509 = vsyncpa [#allocation6], 1
    %510 = vsyncpa [#allocation9], 1
    %511 = vsyncpa [#allocation4], 1
    %s512 = scalar_lea.sflag [#allocation4], 1
    %513 = vsyncpa %s512, 1

</llo_original>
